<compile_context>
chip_gen: v7x
topology: tpu7x:2x2x1
jax: 0.10.0
libtpu: 0.0.40
codegen_flags: <defaults>
</compile_context>

<pallas_src>
import math
import jax
import jax.numpy as jnp
from jax.experimental import pallas as pl
from jax.experimental.pallas import tpu as pltpu


D_IN = 1000   # reduce input features
D_R = 7       # reduce output features
D_L1_IN = 8   # l1 declared input features (mismatch with D_R, see note above)
D_H = 16      # l1 output features
D_OUT = 3     # l2 output features

DEFAULT_TM = 2048          # rows per grid step (bf16 x => ~16 MiB VMEM budget)
_X_BUFFERS = 3             # Buffered(3) on the x stream
_LANE = 128
_MiB = 1024 * 1024
_MAX_VMEM_BUDGET = 40 * _MiB   # stay well under v7x's 64 MiB physical VMEM


def _round_up(a, b):
    return (a + b - 1) // b * b


def _vmem_budget_bytes(tm):
    """Upper-bound VMEM footprint of the pipelined buffers for a given row tile."""
    x_bytes = _X_BUFFERS * tm * _round_up(D_IN, _LANE) * 2            # bf16 x tiles
    out_bytes = 2 * tm * _round_up(D_OUT, _LANE) * 4                  # f32 out tiles
    w_bytes = 2 * 4 * (_round_up(D_IN, 8) * _round_up(D_R, _LANE)     # f32 weights/biases
                       + 8 * _round_up(D_R, _LANE)
                       + _round_up(D_R, 8) * _round_up(D_H, _LANE)
                       + 8 * _round_up(D_H, _LANE)
                       + _round_up(D_H, 8) * _round_up(D_OUT, _LANE)
                       + 8 * _round_up(D_OUT, _LANE))
    return x_bytes + out_bytes + w_bytes


def _global_graph_kernel(x_ref, wr_ref, br_ref, w1_ref, b1_ref, w2_ref, b2_ref,
                         o_ref):
    """One row-tile of the 3-layer MLP. MXU matmuls accumulate in f32."""
    x = x_ref[...]                                     # (TM, 1000) bf16
    # reduce: Linear(1000, 7) + relu -- bf16 operands, f32 accumulation.
    wr = wr_ref[...].astype(jnp.bfloat16)              # tiny resident weight cast
    h0 = jnp.dot(x, wr, preferred_element_type=jnp.float32)            # (TM, 7)
    h0 = jnp.maximum(h0 + br_ref[...], 0.0)
    # l1: Linear(8, 16) + relu  (only first 7 weight rows used == zero-pad h0)
    h1 = jnp.dot(h0, w1_ref[...], preferred_element_type=jnp.float32)  # (TM, 16)
    h1 = jnp.maximum(h1 + b1_ref[...], 0.0)
    # l2: Linear(16, 3)
    out = jnp.dot(h1, w2_ref[...], preferred_element_type=jnp.float32) + b2_ref[...]
    o_ref[...] = out.astype(o_ref.dtype)


def _x_block_spec(tm, use_buffered):
    """x row-tile spec; depth-3 buffering when the installed Pallas supports it."""
    if use_buffered and hasattr(pl, "Buffered"):
        try:
            return pl.BlockSpec((tm, D_IN), lambda i: (i, 0),
                                pipeline_mode=pl.Buffered(3))
        except TypeError:
            pass
    return pl.BlockSpec((tm, D_IN), lambda i: (i, 0))


def _build_call(M, tm, use_buffered):
    grid = (pl.cdiv(M, tm),)

    # Advisory cost estimate: dominated by the [M, 1000] bf16 read.
    flops = 2 * M * (D_IN * D_R + D_R * D_H + D_H * D_OUT)
    bytes_accessed = (2 * M * D_IN                      # bf16 activation stream
                      + 4 * M * D_OUT                   # f32 output
                      + 4 * (D_IN * D_R + D_R + D_R * D_H + D_H
                             + D_H * D_OUT + D_OUT))    # f32 weights/biases

    # Explicit VMEM limit from the real budget (+ headroom); never rely on the
    # per-generation scoped default (16 MiB on v5e, 32 MiB on v6e/v7x).
    vmem_limit = int(min(_vmem_budget_bytes(tm) + 8 * _MiB, 56 * _MiB))

    return pl.pallas_call(
        _global_graph_kernel,
        out_shape=jax.ShapeDtypeStruct((M, D_OUT), jnp.float32),
        grid_spec=pltpu.PrefetchScalarGridSpec(
            num_scalar_prefetch=0,
            grid=grid,
            in_specs=[
                _x_block_spec(tm, use_buffered),                 # x row-tile (streams, bf16)
                pl.BlockSpec((D_IN, D_R), lambda i: (0, 0)),     # W_reduce (resident)
                pl.BlockSpec((1, D_R), lambda i: (0, 0)),        # b_reduce
                pl.BlockSpec((D_R, D_H), lambda i: (0, 0)),      # W_l1 (first 7 rows)
                pl.BlockSpec((1, D_H), lambda i: (0, 0)),        # b_l1
                pl.BlockSpec((D_H, D_OUT), lambda i: (0, 0)),    # W_l2
                pl.BlockSpec((1, D_OUT), lambda i: (0, 0)),      # b_l2
            ],
            out_specs=pl.BlockSpec((tm, D_OUT), lambda i: (i, 0)),
        ),
        compiler_params=pltpu.CompilerParams(
            dimension_semantics=("parallel",),
            vmem_limit_bytes=vmem_limit),
        cost_estimate=pl.CostEstimate(
            flops=flops, transcendentals=0, bytes_accessed=bytes_accessed),
    )


def global_graph_forward(hidden_states, params, *, tm=DEFAULT_TM):
    """hidden_states: [B, N, 1000] (f32 or bf16) -> [B, N, 3] float32."""
    B, N, K = hidden_states.shape
    assert K == D_IN
    M = B * N

    # Row tile: sublane/packing aligned (multiple of 16 for bf16), never larger
    # than needed; halve if a user-supplied tm would blow the VMEM cap.
    tm = max(16, min(tm, pl.cdiv(M, 16) * 16))
    while tm > 16 and _vmem_budget_bytes(tm) > _MAX_VMEM_BUDGET:
        tm //= 2

    # bf16 activation stream.  Ideally the producer already emits bf16 (pass it
    # in directly); otherwise this is a one-time cast at the wrapper boundary.
    x2d = hidden_states.reshape(M, K)
    if x2d.dtype != jnp.bfloat16:
        x2d = x2d.astype(jnp.bfloat16)

    wr, br, w1, b1, w2, b2 = params  # wr:(1000,7) w1:(7,16) w2:(16,3), biases (1,out)

    try:
        out2d = _build_call(M, tm, use_buffered=True)(x2d, wr, br, w1, b1, w2, b2)
    except Exception:
        # Fall back to default depth-2 buffering if Buffered(3) is rejected by
        # this Pallas/Mosaic version; identical numerics, slightly less overlap.
        out2d = _build_call(M, tm, use_buffered=False)(x2d, wr, br, w1, b1, w2, b2)

    return out2d.reshape(B, N, D_OUT)


def init_params(key):
    """Deterministic PyTorch-Linear-style uniform init; weights stored as [in, out]."""
    def linear(key, fan_in, fan_out):
        kw, kb = jax.random.split(key)
        bound = 1.0 / math.sqrt(fan_in)
        w = jax.random.uniform(kw, (fan_in, fan_out), jnp.float32, -bound, bound)
        b = jax.random.uniform(kb, (1, fan_out), jnp.float32, -bound, bound)
        return w, b

    k0, k1, k2 = jax.random.split(key, 3)
    wr, br = linear(k0, D_IN, D_R)                 # reduce: Linear(1000, 7)
    w1_full, b1 = linear(k1, D_L1_IN, D_H)         # l1: Linear(8, 16)
    w1 = w1_full[:D_R, :]                          # zero-pad semantics (see note)
    w2, b2 = linear(k2, D_IN and D_H, D_OUT)       # l2: Linear(16, 3)
    return (wr, br, w1, b1, w2, b2)


def _reference(hidden_states_bf16, params):
    """Matches the kernel's numerics: bf16 operands + f32 accum for `reduce`,
    f32 for the tiny l1/l2 layers."""
    wr, br, w1, b1, w2, b2 = params
    h = jnp.dot(hidden_states_bf16, wr.astype(jnp.bfloat16),
                preferred_element_type=jnp.float32) + br[0]
    h = jnp.maximum(h, 0.0)
    h = jnp.maximum(jnp.dot(h, w1, preferred_element_type=jnp.float32) + b1[0], 0.0)
    return jnp.dot(h, w2, preferred_element_type=jnp.float32) + b2[0]


if __name__ == "__main__":
    key = jax.random.PRNGKey(0)
    kx, kx2, kp = jax.random.split(key, 3)
    params = init_params(kp)

    # Test 1: small shapes, single ragged grid step (M=12 rows, tile rounded to 16).
    B, N = 2, 6
    hs1 = jax.random.normal(kx, (B, N, D_IN), jnp.float32).astype(jnp.bfloat16)
    out = jax.block_until_ready(global_graph_forward(hs1, params))
    ref = _reference(hs1, params)
    assert out.shape == (B, N, D_OUT)
    assert jnp.allclose(out, ref, atol=1e-2, rtol=1e-2)

    # Test 2: multi-step grid with a ragged last block (M=150, tm=64 -> 3 steps).
    B2, N2 = 3, 50
    hs2 = jax.random.normal(kx2, (B2, N2, D_IN), jnp.float32).astype(jnp.bfloat16)
    out2 = jax.block_until_ready(global_graph_forward(hs2, params, tm=64))
    ref2 = _reference(hs2, params)
    assert out2.shape == (B2, N2, D_OUT)
    assert jnp.allclose(out2, ref2, atol=1e-2, rtol=1e-2)

    print("KERNEL_OK")
</pallas_src>

<mosaic_0001>
module attributes {stable_mosaic.version = 11 : i64} {
  func.func @_global_graph_kernel(%arg0: i32, %arg1: memref<16x1000xbf16, #tpu.memory_space<vmem>>, %arg2: memref<1000x7xf32, #tpu.memory_space<vmem>>, %arg3: memref<1x7xf32, #tpu.memory_space<vmem>>, %arg4: memref<7x16xf32, #tpu.memory_space<vmem>>, %arg5: memref<1x16xf32, #tpu.memory_space<vmem>>, %arg6: memref<16x3xf32, #tpu.memory_space<vmem>>, %arg7: memref<1x3xf32, #tpu.memory_space<vmem>>, %arg8: memref<16x3xf32, #tpu.memory_space<vmem>>) attributes {dimension_semantics = [#tpu.dimension_semantics<parallel>], iteration_bounds = array<i64: 1>, scalar_prefetch = 0 : i64, scratch_operands = 0 : i64, tpu.core_type = #tpu.core_type<tc>, window_params = [{transform_indices = @transform_0, window_bounds = array<i64: 16, 1000>}, {pipeline_mode = #tpu.pipeline_mode<synchronous>, transform_indices = @transform_1, window_bounds = array<i64: 1000, 7>}, {pipeline_mode = #tpu.pipeline_mode<synchronous>, transform_indices = @transform_2, window_bounds = array<i64: 1, 7>}, {pipeline_mode = #tpu.pipeline_mode<synchronous>, transform_indices = @transform_3, window_bounds = array<i64: 7, 16>}, {pipeline_mode = #tpu.pipeline_mode<synchronous>, transform_indices = @transform_4, window_bounds = array<i64: 1, 16>}, {pipeline_mode = #tpu.pipeline_mode<synchronous>, transform_indices = @transform_5, window_bounds = array<i64: 16, 3>}, {pipeline_mode = #tpu.pipeline_mode<synchronous>, transform_indices = @transform_6, window_bounds = array<i64: 1, 3>}, {transform_indices = @transform_7, window_bounds = array<i64: 16, 3>}]} {
    %c0 = arith.constant 0 : index
    %c0_0 = arith.constant 0 : index
    %0 = vector.load %arg1[%c0, %c0_0] : memref<16x1000xbf16, #tpu.memory_space<vmem>>, vector<16x1000xbf16>
    %c0_1 = arith.constant 0 : index
    %c0_2 = arith.constant 0 : index
    %1 = vector.load %arg2[%c0_1, %c0_2] : memref<1000x7xf32, #tpu.memory_space<vmem>>, vector<1000x7xf32>
    %2 = arith.truncf %1 : vector<1000x7xf32> to vector<1000x7xbf16>
    %cst = arith.constant dense<0.000000e+00> : vector<16x7xf32>
    %3 = tpu.matmul %0, %2, %cst {dimension_numbers = #tpu.dot_dimension_numbers<[1], [0], [0], [1], [0, 0, 1, 1], [], []>} : vector<16x1000xbf16>, vector<1000x7xbf16>, vector<16x7xf32> -> vector<16x7xf32>
    %c0_3 = arith.constant 0 : index
    %c0_4 = arith.constant 0 : index
    %4 = vector.load %arg3[%c0_3, %c0_4] : memref<1x7xf32, #tpu.memory_space<vmem>>, vector<1x7xf32>
    %5 = vector.broadcast %4 : vector<1x7xf32> to vector<16x7xf32>
    %6 = arith.addf %3, %5 : vector<16x7xf32>
    %cst_5 = arith.constant 0.000000e+00 : f32
    %7 = vector.broadcast %cst_5 : f32 to vector<16x7xf32>
    %8 = arith.maximumf %6, %7 : vector<16x7xf32>
    %c0_6 = arith.constant 0 : index
    %c0_7 = arith.constant 0 : index
    %9 = vector.load %arg4[%c0_6, %c0_7] : memref<7x16xf32, #tpu.memory_space<vmem>>, vector<7x16xf32>
    %cst_8 = arith.constant dense<0.000000e+00> : vector<16x16xf32>
    %10 = tpu.matmul %8, %9, %cst_8 {dimension_numbers = #tpu.dot_dimension_numbers<[1], [0], [0], [1], [0, 0, 1, 1], [], []>} : vector<16x7xf32>, vector<7x16xf32>, vector<16x16xf32> -> vector<16x16xf32>
    %c0_9 = arith.constant 0 : index
    %c0_10 = arith.constant 0 : index
    %11 = vector.load %arg5[%c0_9, %c0_10] : memref<1x16xf32, #tpu.memory_space<vmem>>, vector<1x16xf32>
    %12 = vector.broadcast %11 : vector<1x16xf32> to vector<16x16xf32>
    %13 = arith.addf %10, %12 : vector<16x16xf32>
    %cst_11 = arith.constant 0.000000e+00 : f32
    %14 = vector.broadcast %cst_11 : f32 to vector<16x16xf32>
    %15 = arith.maximumf %13, %14 : vector<16x16xf32>
    %c0_12 = arith.constant 0 : index
    %c0_13 = arith.constant 0 : index
    %16 = vector.load %arg6[%c0_12, %c0_13] : memref<16x3xf32, #tpu.memory_space<vmem>>, vector<16x3xf32>
    %cst_14 = arith.constant dense<0.000000e+00> : vector<16x3xf32>
    %17 = tpu.matmul %15, %16, %cst_14 {dimension_numbers = #tpu.dot_dimension_numbers<[1], [0], [0], [1], [0, 0, 1, 1], [], []>} : vector<16x16xf32>, vector<16x3xf32>, vector<16x3xf32> -> vector<16x3xf32>
    %c0_15 = arith.constant 0 : index
    %c0_16 = arith.constant 0 : index
    %18 = vector.load %arg7[%c0_15, %c0_16] : memref<1x3xf32, #tpu.memory_space<vmem>>, vector<1x3xf32>
    %19 = vector.broadcast %18 : vector<1x3xf32> to vector<16x3xf32>
    %20 = arith.addf %17, %19 : vector<16x3xf32>
    %c0_17 = arith.constant 0 : index
    %c0_18 = arith.constant 0 : index
    %21 = vector.load %arg8[%c0_17, %c0_18] : memref<16x3xf32, #tpu.memory_space<vmem>>, vector<16x3xf32>
    tpu.vector_store %arg8[%c0_17, %c0_18], %20 {strides = array<i32>} : memref<16x3xf32, #tpu.memory_space<vmem>>, vector<16x3xf32>,
    return
  }
  func.func @transform_0(%arg0: i32) -> (i32, i32) {
    %c0_i32 = arith.constant 0 : i32
    %c0_i32_0 = arith.constant 0 : i32
    return %arg0, %c0_i32 : i32, i32
  }
  func.func @transform_1(%arg0: i32) -> (i32, i32) {
    %c0_i32 = arith.constant 0 : i32
    %c0_i32_0 = arith.constant 0 : i32
    %c0_i32_1 = arith.constant 0 : i32
    return %c0_i32, %c0_i32_0 : i32, i32
  }
  func.func @transform_2(%arg0: i32) -> (i32, i32) {
    %c0_i32 = arith.constant 0 : i32
    %c0_i32_0 = arith.constant 0 : i32
    %c0_i32_1 = arith.constant 0 : i32
    return %c0_i32, %c0_i32_0 : i32, i32
  }
  func.func @transform_3(%arg0: i32) -> (i32, i32) {
    %c0_i32 = arith.constant 0 : i32
    %c0_i32_0 = arith.constant 0 : i32
    %c0_i32_1 = arith.constant 0 : i32
    return %c0_i32, %c0_i32_0 : i32, i32
  }
  func.func @transform_4(%arg0: i32) -> (i32, i32) {
    %c0_i32 = arith.constant 0 : i32
    %c0_i32_0 = arith.constant 0 : i32
    %c0_i32_1 = arith.constant 0 : i32
    return %c0_i32, %c0_i32_0 : i32, i32
  }
  func.func @transform_5(%arg0: i32) -> (i32, i32) {
    %c0_i32 = arith.constant 0 : i32
    %c0_i32_0 = arith.constant 0 : i32
    %c0_i32_1 = arith.constant 0 : i32
    return %c0_i32, %c0_i32_0 : i32, i32
  }
  func.func @transform_6(%arg0: i32) -> (i32, i32) {
    %c0_i32 = arith.constant 0 : i32
    %c0_i32_0 = arith.constant 0 : i32
    %c0_i32_1 = arith.constant 0 : i32
    return %c0_i32, %c0_i32_0 : i32, i32
  }
  func.func @transform_7(%arg0: i32) -> (i32, i32) {
    %c0_i32 = arith.constant 0 : i32
    %c0_i32_0 = arith.constant 0 : i32
    return %arg0, %c0_i32 : i32, i32
  }
}

</mosaic_0001>

<llo_original>
// kernel: tpu_custom_call.1
$region0: #{tpu_custom_call.1}
  #allocation0 [shape = 'u32[]', space=smem, size = 0x4, offset = 0x4, fixed_abs, tag = 'smem constant byte address 0x4 - core index']
  #allocation1 [shape = 'u32[144,128]{1,0:T(1,128)}', space=vmem, size = 0x12000, scoped, tag = 'internal scratch']
  %s0 = inlined_call_operand.vmem [shape: bf16[12,1000], index: 0, kind: input, shape index: {}]
  %s1 = inlined_call_operand.vmem [shape: f32[1000,7], index: 1, kind: input, shape index: {}]
  %s2 = inlined_call_operand.vmem [shape: f32[1,7], index: 2, kind: input, shape index: {}]
  %s3 = inlined_call_operand.vmem [shape: f32[7,16], index: 3, kind: input, shape index: {}]
  %s4 = inlined_call_operand.vmem [shape: f32[1,16], index: 4, kind: input, shape index: {}]
  %s5 = inlined_call_operand.vmem [shape: f32[16,3], index: 5, kind: input, shape index: {}]
  %s6 = inlined_call_operand.vmem [shape: f32[1,3], index: 6, kind: input, shape index: {}]
  %s7 = inlined_call_operand.vmem [shape: f32[12,3], index: 7, kind: output, shape index: {}]
  %s8 = sld [smem:[#allocation0]]
  $region38: #{tpu_custom_call.1} parent=0
    _
  %s10 = ssub.s32 1, %s8
  %s11 = scalar_select 0, %s10, %s8
  // Predicated region
  $region2: #{tpu_custom_call.1} parent=0 // pred_check
    _
  $region3: #{tpu_custom_call.1} parent=0 // pred_check_branch
    %13 = sbr.rel (0) target = $region5
  $region4: #{tpu_custom_call.1} parent=0 // pred_region
    _
  $region5: #{tpu_custom_call.1} parent=0 // pred_fallthru
    _
  // Predicated region
  $region6: #{tpu_custom_call.1} parent=0 // pred_check
    _
  $region7: #{tpu_custom_call.1} parent=0 // pred_check_branch
    %15 = sbr.rel (0) target = $region9
  $region8: #{tpu_custom_call.1} parent=0 // pred_region
    _
  $region9: #{tpu_custom_call.1} parent=0 // pred_fallthru
    _
  // Predicated region
  $region10: #{tpu_custom_call.1} parent=0 // pred_check
    _
  $region11: #{tpu_custom_call.1} parent=0 // pred_check_branch
    %17 = sbr.rel (0) target = $region13
  $region12: #{tpu_custom_call.1} parent=0 // pred_region
    _
  $region13: #{tpu_custom_call.1} parent=0 // pred_fallthru
    _
  // Predicated region
  $region14: #{tpu_custom_call.1} parent=0 // pred_check
    _
  $region15: #{tpu_custom_call.1} parent=0 // pred_check_branch
    %19 = sbr.rel (0) target = $region17
  $region16: #{tpu_custom_call.1} parent=0 // pred_region
    _
  $region17: #{tpu_custom_call.1} parent=0 // pred_fallthru
    _
  // Predicated region
  $region18: #{tpu_custom_call.1} parent=0 // pred_check
    _
  $region19: #{tpu_custom_call.1} parent=0 // pred_check_branch
    %21 = sbr.rel (0) target = $region21
  $region20: #{tpu_custom_call.1} parent=0 // pred_region
    _
  $region21: #{tpu_custom_call.1} parent=0 // pred_fallthru
    _
  // Predicated region
  $region22: #{tpu_custom_call.1} parent=0 // pred_check
    _
  $region23: #{tpu_custom_call.1} parent=0 // pred_check_branch
    %23 = sbr.rel (0) target = $region25
  $region24: #{tpu_custom_call.1} parent=0 // pred_region
    _
  $region25: #{tpu_custom_call.1} parent=0 // pred_fallthru
    _
  // Predicated region
  $region26: #{tpu_custom_call.1} parent=0 // pred_check
    _
  $region27: #{tpu_custom_call.1} parent=0 // pred_check_branch
    %25 = sbr.rel (0) target = $region29
  $region28: #{tpu_custom_call.1} parent=0 // pred_region
    _
  $region29: #{tpu_custom_call.1} parent=0 // pred_fallthru
    _
  %v27 = vld [vmem:[%s0] sm:$0xff]
  %v28 = vld [vmem:[%s0 + $0x8] sm:$0xff]
  %v29 = vld [vmem:[%s0 + $0x10] sm:$0xff]
  %v30 = vld [vmem:[%s0 + $0x18] sm:$0xff]
  %v31 = vld [vmem:[%s0 + $0x20] sm:$0xff]
  %v32 = vld [vmem:[%s0 + $0x28] sm:$0xff]
  %v33 = vld [vmem:[%s0 + $0x30] sm:$0xff]
  %v34 = vld [vmem:[%s0 + $0x38] sm:$0xff]
  %v35 = vld [vmem:[%s1] sm:$0xff]
  %v36 = vld [vmem:[%s1 + $0x8] sm:$0xff]
  %v37 = vld [vmem:[%s1 + $0x10] sm:$0xff]
  %v38 = vld [vmem:[%s1 + $0x18] sm:$0xff]
  %v39 = vld [vmem:[%s1 + $0x20] sm:$0xff]
  %v40 = vld [vmem:[%s1 + $0x28] sm:$0xff]
  %v41 = vld [vmem:[%s1 + $0x30] sm:$0xff]
  %v42 = vld [vmem:[%s1 + $0x38] sm:$0xff]
  %v43 = vld [vmem:[%s1 + $0x40] sm:$0xff]
  %v44 = vld [vmem:[%s1 + $0x48] sm:$0xff]
  %v45 = vld [vmem:[%s1 + $0x50] sm:$0xff]
  %v46 = vld [vmem:[%s1 + $0x58] sm:$0xff]
  %v47 = vld [vmem:[%s1 + $0x60] sm:$0xff]
  %v48 = vld [vmem:[%s1 + $0x68] sm:$0xff]
  %v49 = vld [vmem:[%s1 + $0x70] sm:$0xff]
  %v50 = vld [vmem:[%s1 + $0x78] sm:$0xff]
  %v51 = vld [vmem:[%s1 + $0x80] sm:$0xff]
  %v52 = vld [vmem:[%s1 + $0x88] sm:$0xff]
  %v53 = vld [vmem:[%s1 + $0x90] sm:$0xff]
  %v54 = vld [vmem:[%s1 + $0x98] sm:$0xff]
  %v55 = vld [vmem:[%s1 + $0xa0] sm:$0xff]
  %v56 = vld [vmem:[%s1 + $0xa8] sm:$0xff]
  %v57 = vld [vmem:[%s1 + $0xb0] sm:$0xff]
  %v58 = vld [vmem:[%s1 + $0xb8] sm:$0xff]
  %v59 = vld [vmem:[%s1 + $0xc0] sm:$0xff]
  %v60 = vld [vmem:[%s1 + $0xc8] sm:$0xff]
  %v61 = vld [vmem:[%s1 + $0xd0] sm:$0xff]
  %v62 = vld [vmem:[%s1 + $0xd8] sm:$0xff]
  %v63 = vld [vmem:[%s1 + $0xe0] sm:$0xff]
  %v64 = vld [vmem:[%s1 + $0xe8] sm:$0xff]
  %v65 = vld [vmem:[%s1 + $0xf0] sm:$0xff]
  %v66 = vld [vmem:[%s1 + $0xf8] sm:$0xff]
  %v67 = vld [vmem:[%s1 + $0x100] sm:$0xff]
  %v68 = vld [vmem:[%s1 + $0x108] sm:$0xff]
  %v69 = vld [vmem:[%s1 + $0x110] sm:$0xff]
  %v70 = vld [vmem:[%s1 + $0x118] sm:$0xff]
  %v71 = vld [vmem:[%s1 + $0x120] sm:$0xff]
  %v72 = vld [vmem:[%s1 + $0x128] sm:$0xff]
  %v73 = vld [vmem:[%s1 + $0x130] sm:$0xff]
  %v74 = vld [vmem:[%s1 + $0x138] sm:$0xff]
  %v75 = vld [vmem:[%s1 + $0x140] sm:$0xff]
  %v76 = vld [vmem:[%s1 + $0x148] sm:$0xff]
  %v77 = vld [vmem:[%s1 + $0x150] sm:$0xff]
  %v78 = vld [vmem:[%s1 + $0x158] sm:$0xff]
  %v79 = vld [vmem:[%s1 + $0x160] sm:$0xff]
  %v80 = vld [vmem:[%s1 + $0x168] sm:$0xff]
  %v81 = vld [vmem:[%s1 + $0x170] sm:$0xff]
  %v82 = vld [vmem:[%s1 + $0x178] sm:$0xff]
  %v83 = vld [vmem:[%s1 + $0x180] sm:$0xff]
  %v84 = vld [vmem:[%s1 + $0x188] sm:$0xff]
  %v85 = vld [vmem:[%s1 + $0x190] sm:$0xff]
  %v86 = vld [vmem:[%s1 + $0x198] sm:$0xff]
  %v87 = vld [vmem:[%s1 + $0x1a0] sm:$0xff]
  %v88 = vld [vmem:[%s1 + $0x1a8] sm:$0xff]
  %v89 = vld [vmem:[%s1 + $0x1b0] sm:$0xff]
  %v90 = vld [vmem:[%s1 + $0x1b8] sm:$0xff]
  %v91 = vld [vmem:[%s1 + $0x1c0] sm:$0xff]
  %v92 = vld [vmem:[%s1 + $0x1c8] sm:$0xff]
  %v93 = vld [vmem:[%s1 + $0x1d0] sm:$0xff]
  %v94 = vld [vmem:[%s1 + $0x1d8] sm:$0xff]
  %v95 = vld [vmem:[%s1 + $0x1e0] sm:$0xff]
  %v96 = vld [vmem:[%s1 + $0x1e8] sm:$0xff]
  %v97 = vld [vmem:[%s1 + $0x1f0] sm:$0xff]
  %v98 = vld [vmem:[%s1 + $0x1f8] sm:$0xff]
  %v99 = vld [vmem:[%s1 + $0x200] sm:$0xff]
  %v100 = vld [vmem:[%s1 + $0x208] sm:$0xff]
  %v101 = vld [vmem:[%s1 + $0x210] sm:$0xff]
  %v102 = vld [vmem:[%s1 + $0x218] sm:$0xff]
  %v103 = vld [vmem:[%s1 + $0x220] sm:$0xff]
  %v104 = vld [vmem:[%s1 + $0x228] sm:$0xff]
  %v105 = vld [vmem:[%s1 + $0x230] sm:$0xff]
  %v106 = vld [vmem:[%s1 + $0x238] sm:$0xff]
  %v107 = vld [vmem:[%s1 + $0x240] sm:$0xff]
  %v108 = vld [vmem:[%s1 + $0x248] sm:$0xff]
  %v109 = vld [vmem:[%s1 + $0x250] sm:$0xff]
  %v110 = vld [vmem:[%s1 + $0x258] sm:$0xff]
  %v111 = vld [vmem:[%s1 + $0x260] sm:$0xff]
  %v112 = vld [vmem:[%s1 + $0x268] sm:$0xff]
  %v113 = vld [vmem:[%s1 + $0x270] sm:$0xff]
  %v114 = vld [vmem:[%s1 + $0x278] sm:$0xff]
  %v115 = vld [vmem:[%s1 + $0x280] sm:$0xff]
  %v116 = vld [vmem:[%s1 + $0x288] sm:$0xff]
  %v117 = vld [vmem:[%s1 + $0x290] sm:$0xff]
  %v118 = vld [vmem:[%s1 + $0x298] sm:$0xff]
  %v119 = vld [vmem:[%s1 + $0x2a0] sm:$0xff]
  %v120 = vld [vmem:[%s1 + $0x2a8] sm:$0xff]
  %v121 = vld [vmem:[%s1 + $0x2b0] sm:$0xff]
  %v122 = vld [vmem:[%s1 + $0x2b8] sm:$0xff]
  %v123 = vld [vmem:[%s1 + $0x2c0] sm:$0xff]
  %v124 = vld [vmem:[%s1 + $0x2c8] sm:$0xff]
  %v125 = vld [vmem:[%s1 + $0x2d0] sm:$0xff]
  %v126 = vld [vmem:[%s1 + $0x2d8] sm:$0xff]
  %v127 = vld [vmem:[%s1 + $0x2e0] sm:$0xff]
  %v128 = vld [vmem:[%s1 + $0x2e8] sm:$0xff]
  %v129 = vld [vmem:[%s1 + $0x2f0] sm:$0xff]
  %v130 = vld [vmem:[%s1 + $0x2f8] sm:$0xff]
  %v131 = vld [vmem:[%s1 + $0x300] sm:$0xff]
  %v132 = vld [vmem:[%s1 + $0x308] sm:$0xff]
  %v133 = vld [vmem:[%s1 + $0x310] sm:$0xff]
  %v134 = vld [vmem:[%s1 + $0x318] sm:$0xff]
  %v135 = vld [vmem:[%s1 + $0x320] sm:$0xff]
  %v136 = vld [vmem:[%s1 + $0x328] sm:$0xff]
  %v137 = vld [vmem:[%s1 + $0x330] sm:$0xff]
  %v138 = vld [vmem:[%s1 + $0x338] sm:$0xff]
  %v139 = vld [vmem:[%s1 + $0x340] sm:$0xff]
  %v140 = vld [vmem:[%s1 + $0x348] sm:$0xff]
  %v141 = vld [vmem:[%s1 + $0x350] sm:$0xff]
  %v142 = vld [vmem:[%s1 + $0x358] sm:$0xff]
  %v143 = vld [vmem:[%s1 + $0x360] sm:$0xff]
  %v144 = vld [vmem:[%s1 + $0x368] sm:$0xff]
  %v145 = vld [vmem:[%s1 + $0x370] sm:$0xff]
  %v146 = vld [vmem:[%s1 + $0x378] sm:$0xff]
  %v147 = vld [vmem:[%s1 + $0x380] sm:$0xff]
  %v148 = vld [vmem:[%s1 + $0x388] sm:$0xff]
  %v149 = vld [vmem:[%s1 + $0x390] sm:$0xff]
  %v150 = vld [vmem:[%s1 + $0x398] sm:$0xff]
  %v151 = vld [vmem:[%s1 + $0x3a0] sm:$0xff]
  %v152 = vld [vmem:[%s1 + $0x3a8] sm:$0xff]
  %v153 = vld [vmem:[%s1 + $0x3b0] sm:$0xff]
  %v154 = vld [vmem:[%s1 + $0x3b8] sm:$0xff]
  %v155 = vld [vmem:[%s1 + $0x3c0] sm:$0xff]
  %v156 = vld [vmem:[%s1 + $0x3c8] sm:$0xff]
  %v157 = vld [vmem:[%s1 + $0x3d0] sm:$0xff]
  %v158 = vld [vmem:[%s1 + $0x3d8] sm:$0xff]
  %v159 = vld [vmem:[%s1 + $0x3e0] sm:$0xff]
  %v160 = vpack.c.bf16 %v36, %v35
  %v161 = vpack.c.bf16 %v38, %v37
  %v162 = vpack.c.bf16 %v40, %v39
  %v163 = vpack.c.bf16 %v42, %v41
  %v164 = vpack.c.bf16 %v44, %v43
  %v165 = vpack.c.bf16 %v46, %v45
  %v166 = vpack.c.bf16 %v48, %v47
  %v167 = vpack.c.bf16 %v50, %v49
  %v168 = vpack.c.bf16 %v52, %v51
  %v169 = vpack.c.bf16 %v54, %v53
  %v170 = vpack.c.bf16 %v56, %v55
  %v171 = vpack.c.bf16 %v58, %v57
  %v172 = vpack.c.bf16 %v60, %v59
  %v173 = vpack.c.bf16 %v62, %v61
  %v174 = vpack.c.bf16 %v64, %v63
  %v175 = vpack.c.bf16 %v66, %v65
  %v176 = vpack.c.bf16 %v68, %v67
  %v177 = vpack.c.bf16 %v70, %v69
  %v178 = vpack.c.bf16 %v72, %v71
  %v179 = vpack.c.bf16 %v74, %v73
  %v180 = vpack.c.bf16 %v76, %v75
  %v181 = vpack.c.bf16 %v78, %v77
  %v182 = vpack.c.bf16 %v80, %v79
  %v183 = vpack.c.bf16 %v82, %v81
  %v184 = vpack.c.bf16 %v84, %v83
  %v185 = vpack.c.bf16 %v86, %v85
  %v186 = vpack.c.bf16 %v88, %v87
  %v187 = vpack.c.bf16 %v90, %v89
  %v188 = vpack.c.bf16 %v92, %v91
  %v189 = vpack.c.bf16 %v94, %v93
  %v190 = vpack.c.bf16 %v96, %v95
  %v191 = vpack.c.bf16 %v98, %v97
  %v192 = vpack.c.bf16 %v100, %v99
  %v193 = vpack.c.bf16 %v102, %v101
  %v194 = vpack.c.bf16 %v104, %v103
  %v195 = vpack.c.bf16 %v106, %v105
  %v196 = vpack.c.bf16 %v108, %v107
  %v197 = vpack.c.bf16 %v110, %v109
  %v198 = vpack.c.bf16 %v112, %v111
  %v199 = vpack.c.bf16 %v114, %v113
  %v200 = vpack.c.bf16 %v116, %v115
  %v201 = vpack.c.bf16 %v118, %v117
  %v202 = vpack.c.bf16 %v120, %v119
  %v203 = vpack.c.bf16 %v122, %v121
  %v204 = vpack.c.bf16 %v124, %v123
  %v205 = vpack.c.bf16 %v126, %v125
  %v206 = vpack.c.bf16 %v128, %v127
  %v207 = vpack.c.bf16 %v130, %v129
  %v208 = vpack.c.bf16 %v132, %v131
  %v209 = vpack.c.bf16 %v134, %v133
  %v210 = vpack.c.bf16 %v136, %v135
  %v211 = vpack.c.bf16 %v138, %v137
  %v212 = vpack.c.bf16 %v140, %v139
  %v213 = vpack.c.bf16 %v142, %v141
  %v214 = vpack.c.bf16 %v144, %v143
  %v215 = vpack.c.bf16 %v146, %v145
  %v216 = vpack.c.bf16 %v148, %v147
  %v217 = vpack.c.bf16 %v150, %v149
  %v218 = vpack.c.bf16 %v152, %v151
  %v219 = vpack.c.bf16 %v154, %v153
  %v220 = vpack.c.bf16 %v156, %v155
  %v221 = vpack.c.bf16 %v158, %v157
  %v222 = vpack.c.bf16 %v159, %v159
  %v223 = vld [vmem:[%s2] sm:$0x1]
  %v225 = vlaneseq
  %v226 = vshrl.u32 %v225, 7
  %v227 = vsub.s32 0, %v226
  %v228 = vrot.slane %v223, %v227
  %v238 = vunpack.c.l.b16 %v27
  %v239 = vunpack.c.h.b16 %v27
  %v240 = vunpack.c.l.b16 %v28
  %v241 = vunpack.c.h.b16 %v28
  %v242 = vunpack.c.l.b16 %v29
  %v243 = vunpack.c.h.b16 %v29
  %v244 = vunpack.c.l.b16 %v30
  %v245 = vunpack.c.h.b16 %v30
  %v246 = vunpack.c.l.b16 %v31
  %v247 = vunpack.c.h.b16 %v31
  %v248 = vunpack.c.l.b16 %v32
  %v249 = vunpack.c.h.b16 %v32
  %v250 = vunpack.c.l.b16 %v33
  %v251 = vunpack.c.h.b16 %v33
  %v252 = vunpack.c.l.b16 %v34
  %v253 = vunpack.c.h.b16 %v34
  %v254 = vpack.c.b16 %v246, %v238
  %v255 = vpack.c.b16 %v247, %v239
  %v256 = vpack.c.b16 %v248, %v240
  %v257 = vpack.c.b16 %v249, %v241
  %v258 = vpack.c.b16 %v250, %v242
  %v259 = vpack.c.b16 %v251, %v243
  %v260 = vpack.c.b16 %v252, %v244
  %v261 = vpack.c.b16 %v253, %v245
  %vm269 = vcmask 850944
  %v271 = vsel %vm269, %v261, 0
  %vm273 = vcmask 1043456
  %v275 = vsel %vm273, %v222, 0
  %277 = vmatprep.subr.bf16.mxu0 0
  %278 = vmatpush1.bf16.msra.mxu0 %v160
  %279 = vmatprep.subr.bf16.mxu0 0
  %280 = vmatpush1.bf16.msra.mxu0 %v161
  %281 = vmatprep.subr.bf16.mxu0 0
  %282 = vmatpush1.bf16.msra.mxu0 %v162
  %283 = vmatprep.subr.bf16.mxu0 0
  %284 = vmatpush1.bf16.msra.mxu0 %v163
  %285 = vmatprep.subr.bf16.mxu0 0
  %286 = vmatpush1.bf16.msra.mxu0 %v164
  %287 = vmatprep.subr.bf16.mxu0 0
  %288 = vmatpush1.bf16.msra.mxu0 %v165
  %289 = vmatprep.subr.bf16.mxu0 0
  %290 = vmatpush1.bf16.msra.mxu0 %v166
  %291 = vmatprep.subr.bf16.mxu0 0
  %292 = vmatpush1.bf16.msra.mxu0 %v167
  %293 = vmatprep.subr.bf16.mxu0 0
  %294 = vmatpush1.bf16.msra.mxu0 %v168
  %295 = vmatprep.subr.bf16.mxu0 0
  %296 = vmatpush1.bf16.msra.mxu0 %v169
  %297 = vmatprep.subr.bf16.mxu0 0
  %298 = vmatpush1.bf16.msra.mxu0 %v170
  %299 = vmatprep.subr.bf16.mxu0 0
  %300 = vmatpush1.bf16.msra.mxu0 %v171
  %301 = vmatprep.subr.bf16.mxu0 0
  %302 = vmatpush1.bf16.msra.mxu0 %v172
  %303 = vmatprep.subr.bf16.mxu0 0
  %304 = vmatpush1.bf16.msra.mxu0 %v173
  %305 = vmatprep.subr.bf16.mxu0 0
  %306 = vmatpush1.bf16.msra.mxu0 %v174
  %307 = vmatprep.subr.bf16.mxu0 0
  %308 = vmatpush1.bf16.msra.mxu0 %v175
  %309 = vmatprep.mubr.bf16.mxu0 %v255
  %310 = vmatmul.mubr.bf16.gmra.mrb[0].mxu0 %v254
  %v311 = vpop.f32.mrb[0].mxu0
  %v312 = vadd.f32 %v228, %v311
  %v313 = vpop.f32.mrb[0].mxu0
  %v314 = vpop.f32.mrb[0].mxu0
  %v315 = vadd.f32 %v228, %v314
  %v316 = vpop.f32.mrb[0].mxu0
  %317 = vdwg.mxu0
  %318 = vmatprep.subr.bf16.mxu0 0
  %319 = vmatpush1.bf16.msra.mxu0 %v176
  %320 = vmatprep.subr.bf16.mxu0 0
  %321 = vmatpush1.bf16.msra.mxu0 %v177
  %322 = vmatprep.subr.bf16.mxu0 0
  %323 = vmatpush1.bf16.msra.mxu0 %v178
  %324 = vmatprep.subr.bf16.mxu0 0
  %325 = vmatpush1.bf16.msra.mxu0 %v179
  %326 = vmatprep.subr.bf16.mxu0 0
  %327 = vmatpush1.bf16.msra.mxu0 %v180
  %328 = vmatprep.subr.bf16.mxu0 0
  %329 = vmatpush1.bf16.msra.mxu0 %v181
  %330 = vmatprep.subr.bf16.mxu0 0
  %331 = vmatpush1.bf16.msra.mxu0 %v182
  %332 = vmatprep.subr.bf16.mxu0 0
  %333 = vmatpush1.bf16.msra.mxu0 %v183
  %334 = vmatprep.subr.bf16.mxu0 0
  %335 = vmatpush1.bf16.msra.mxu0 %v184
  %336 = vmatprep.subr.bf16.mxu0 0
  %337 = vmatpush1.bf16.msra.mxu0 %v185
  %338 = vmatprep.subr.bf16.mxu0 0
  %339 = vmatpush1.bf16.msra.mxu0 %v186
  %340 = vmatprep.subr.bf16.mxu0 0
  %341 = vmatpush1.bf16.msra.mxu0 %v187
  %342 = vmatprep.subr.bf16.mxu0 0
  %343 = vmatpush1.bf16.msra.mxu0 %v188
  %344 = vmatprep.subr.bf16.mxu0 0
  %345 = vmatpush1.bf16.msra.mxu0 %v189
  %346 = vmatprep.subr.bf16.mxu0 0
  %347 = vmatpush1.bf16.msra.mxu0 %v190
  %348 = vmatprep.subr.bf16.mxu0 0
  %349 = vmatpush1.bf16.msra.mxu0 %v191
  %350 = vmatprep.mubr.bf16.mxu0 %v257
  %351 = vmatmul.mubr.bf16.gmra.mrb[0].mxu0 %v256
  %v352 = vpop.f32.mrb[0].mxu0
  %v353 = vadd.f32 %v312, %v352
  %v354 = vpop.f32.mrb[0].mxu0
  %v355 = vpop.f32.mrb[0].mxu0
  %v356 = vadd.f32 %v315, %v355
  %v357 = vpop.f32.mrb[0].mxu0
  %358 = vdwg.mxu0
  %359 = vmatprep.subr.bf16.mxu0 0
  %360 = vmatpush1.bf16.msra.mxu0 %v192
  %361 = vmatprep.subr.bf16.mxu0 0
  %362 = vmatpush1.bf16.msra.mxu0 %v193
  %363 = vmatprep.subr.bf16.mxu0 0
  %364 = vmatpush1.bf16.msra.mxu0 %v194
  %365 = vmatprep.subr.bf16.mxu0 0
  %366 = vmatpush1.bf16.msra.mxu0 %v195
  %367 = vmatprep.subr.bf16.mxu0 0
  %368 = vmatpush1.bf16.msra.mxu0 %v196
  %369 = vmatprep.subr.bf16.mxu0 0
  %370 = vmatpush1.bf16.msra.mxu0 %v197
  %371 = vmatprep.subr.bf16.mxu0 0
  %372 = vmatpush1.bf16.msra.mxu0 %v198
  %373 = vmatprep.subr.bf16.mxu0 0
  %374 = vmatpush1.bf16.msra.mxu0 %v199
  %375 = vmatprep.subr.bf16.mxu0 0
  %376 = vmatpush1.bf16.msra.mxu0 %v200
  %377 = vmatprep.subr.bf16.mxu0 0
  %378 = vmatpush1.bf16.msra.mxu0 %v201
  %379 = vmatprep.subr.bf16.mxu0 0
  %380 = vmatpush1.bf16.msra.mxu0 %v202
  %381 = vmatprep.subr.bf16.mxu0 0
  %382 = vmatpush1.bf16.msra.mxu0 %v203
  %383 = vmatprep.subr.bf16.mxu0 0
  %384 = vmatpush1.bf16.msra.mxu0 %v204
  %385 = vmatprep.subr.bf16.mxu0 0
  %386 = vmatpush1.bf16.msra.mxu0 %v205
  %387 = vmatprep.subr.bf16.mxu0 0
  %388 = vmatpush1.bf16.msra.mxu0 %v206
  %389 = vmatprep.subr.bf16.mxu0 0
  %390 = vmatpush1.bf16.msra.mxu0 %v207
  %391 = vmatprep.mubr.bf16.mxu0 %v259
  %392 = vmatmul.mubr.bf16.gmra.mrb[0].mxu0 %v258
  %v393 = vpop.f32.mrb[0].mxu0
  %v394 = vadd.f32 %v353, %v393
  %v395 = vpop.f32.mrb[0].mxu0
  %v396 = vpop.f32.mrb[0].mxu0
  %v397 = vadd.f32 %v356, %v396
  %v398 = vpop.f32.mrb[0].mxu0
  %399 = vdwg.mxu0
  %400 = vmatprep.subr.bf16.mxu0 0
  %401 = vmatpush1.bf16.msra.mxu0 %v208
  %402 = vmatprep.subr.bf16.mxu0 0
  %403 = vmatpush1.bf16.msra.mxu0 %v209
  %404 = vmatprep.subr.bf16.mxu0 0
  %405 = vmatpush1.bf16.msra.mxu0 %v210
  %406 = vmatprep.subr.bf16.mxu0 0
  %407 = vmatpush1.bf16.msra.mxu0 %v211
  %408 = vmatprep.subr.bf16.mxu0 0
  %409 = vmatpush1.bf16.msra.mxu0 %v212
  %410 = vmatprep.subr.bf16.mxu0 0
  %411 = vmatpush1.bf16.msra.mxu0 %v213
  %412 = vmatprep.subr.bf16.mxu0 0
  %413 = vmatpush1.bf16.msra.mxu0 %v214
  %414 = vmatprep.subr.bf16.mxu0 0
  %415 = vmatpush1.bf16.msra.mxu0 %v215
  %416 = vmatprep.subr.bf16.mxu0 0
  %417 = vmatpush1.bf16.msra.mxu0 %v216
  %418 = vmatprep.subr.bf16.mxu0 0
  %419 = vmatpush1.bf16.msra.mxu0 %v217
  %420 = vmatprep.subr.bf16.mxu0 0
  %421 = vmatpush1.bf16.msra.mxu0 %v218
  %422 = vmatprep.subr.bf16.mxu0 0
  %423 = vmatpush1.bf16.msra.mxu0 %v219
  %424 = vmatprep.subr.bf16.mxu0 0
  %425 = vmatpush1.bf16.msra.mxu0 %v220
  %426 = vmatprep.subr.bf16.mxu0 0
  %427 = vmatpush1.bf16.msra.mxu0 %v221
  %428 = vmatprep.subr.bf16.mxu0 0
  %429 = vmatpush1.bf16.msra.mxu0 %v275
  %430 = vmatprep.subr.bf16.mxu0 0
  %431 = vmatpush1.bf16.msra.mxu0 0
  %432 = vmatprep.mubr.bf16.mxu0 %v271
  %433 = vmatmul.mubr.bf16.gmra.mrb[0].mxu0 %v260
  %v434 = vpop.f32.mrb[0].mxu0
  %v435 = vadd.f32 %v394, %v434
  %v436 = vpop.f32.mrb[0].mxu0
  %v437 = vpop.f32.mrb[0].mxu0
  %v438 = vadd.f32 %v397, %v437
  %v439 = vpop.f32.mrb[0].mxu0
  %440 = vdwg.mxu0
  %v441 = vmax.f32 %v435, 0.0
  %v442 = vmax.f32 %v438, 0.0
  %v443 = vld [vmem:[%s3] sm:$0x7f]
  %v444 = vld [vmem:[%s4] sm:$0x1]
  %v446 = vlaneseq
  %v447 = vshrl.u32 %v446, 7
  %v448 = vsub.s32 0, %v447
  %v449 = vrot.slane %v444, %v448
  %vm451 = vcmask 56320
  %v453 = vsel %vm451, %v441, 0
  %v456 = vsel %vm451, %v442, 0
  %vm458 = vcmask 1046528
  %v460 = vsel %vm458, %v443, 0
  %462 = vmatprep.subr.mxu0 0.0
  %463 = vmatpush1.msra.mxu0 %v460
  %464 = vmatprep.subr.mxu0 0.0
  %465 = vmatpush1.msra.mxu0 0.0
  %466 = vmatprep.subr.mxu0 0.0
  %467 = vmatpush1.msra.mxu0 0.0
  %468 = vmatprep.subr.mxu0 0.0
  %469 = vmatpush1.msra.mxu0 0.0
  %470 = vmatprep.subr.mxu0 0.0
  %471 = vmatpush1.msra.mxu0 0.0
  %472 = vmatprep.subr.mxu0 0.0
  %473 = vmatpush1.msra.mxu0 0.0
  %474 = vmatprep.subr.mxu0 0.0
  %475 = vmatpush1.msra.mxu0 0.0
  %476 = vmatprep.subr.mxu0 0.0
  %477 = vmatpush1.msra.mxu0 0.0
  %478 = vmatprep.subr.mxu0 0.0
  %479 = vmatpush1.msra.mxu0 0.0
  %480 = vmatprep.subr.mxu0 0.0
  %481 = vmatpush1.msra.mxu0 0.0
  %482 = vmatprep.subr.mxu0 0.0
  %483 = vmatpush1.msra.mxu0 0.0
  %484 = vmatprep.subr.mxu0 0.0
  %485 = vmatpush1.msra.mxu0 0.0
  %486 = vmatprep.subr.mxu0 0.0
  %487 = vmatpush1.msra.mxu0 0.0
  %488 = vmatprep.subr.mxu0 0.0
  %489 = vmatpush1.msra.mxu0 0.0
  %490 = vmatprep.subr.mxu0 0.0
  %491 = vmatpush1.msra.mxu0 0.0
  %492 = vmatprep.subr.mxu0 0.0
  %493 = vmatpush1.msra.mxu0 0.0
  %494 = vmatprep.subr.mxu0 0.0
  %495 = vmatpush1.msra.mxu0 0.0
  %496 = vmatprep.subr.mxu0 0.0
  %497 = vmatpush1.msra.mxu0 0.0
  %498 = vmatprep.subr.mxu0 0.0
  %499 = vmatpush1.msra.mxu0 0.0
  %500 = vmatprep.subr.mxu0 0.0
  %501 = vmatpush1.msra.mxu0 0.0
  %502 = vmatprep.subr.mxu0 0.0
  %503 = vmatpush1.msra.mxu0 0.0
  %504 = vmatprep.subr.mxu0 0.0
  %505 = vmatpush1.msra.mxu0 0.0
  %506 = vmatprep.subr.mxu0 0.0
  %507 = vmatpush1.msra.mxu0 0.0
  %508 = vmatprep.subr.mxu0 0.0
  %509 = vmatpush1.msra.mxu0 0.0
  %510 = vmatprep.subr.mxu0 0.0
  %511 = vmatpush1.msra.mxu0 0.0
  %512 = vmatprep.subr.mxu0 0.0
  %513 = vmatpush1.msra.mxu0 0.0
  %514 = vmatprep.subr.mxu0 0.0
  %515 = vmatpush1.msra.mxu0 0.0
  %516 = vmatprep.subr.mxu0 0.0
  %517 = vmatpush1.msra.mxu0 0.0
  %518 = vmatprep.subr.mxu0 0.0
  %519 = vmatpush1.msra.mxu0 0.0
  %520 = vmatprep.subr.mxu0 0.0
  %521 = vmatpush1.msra.mxu0 0.0
  %522 = vmatprep.subr.mxu0 0.0
  %523 = vmatpush1.msra.mxu0 0.0
  %524 = vmatprep.subr.mxu0 0.0
  %525 = vmatpush1.msra.mxu0 0.0
  %526 = vmatprep.mubr.f32.mxu0 0.0
  %527 = vmatmul.mubr.f32.gmra.mrb[0].mxu0 %v453
  %v528 = vpop.f32.mrb[0].mxu0
  %v529 = vadd.f32 %v449, %v528
  %v530 = vpop.f32.mrb[0].mxu0
  %531 = vmatprep.mubr.f32.mxu0 0.0
  %532 = vmatmul.mubr.f32.gmra.mrb[0].mxu0 %v456
  %v533 = vpop.f32.mrb[0].mxu0
  %v534 = vadd.f32 %v449, %v533
  %v535 = vpop.f32.mrb[0].mxu0
  %536 = vdwg.mxu0
  %v537 = vmax.f32 %v529, 0.0
  %v538 = vmax.f32 %v534, 0.0
  %v539 = vld [vmem:[%s5] sm:$0xff]
  %v540 = vld [vmem:[%s5 + $0x8] sm:$0xff]
  %v541 = vld [vmem:[%s6] sm:$0x1]
  %v543 = vlaneseq
  %v544 = vshrl.u32 %v543, 7
  %v545 = vsub.s32 0, %v544
  %v546 = vrot.slane %v541, %v545
  %vm548 = vcmask 130048
  %v550 = vsel %vm548, %v537, 0
  %v553 = vsel %vm548, %v538, 0
  %555 = vmatprep.subr.mxu0 0.0
  %556 = vmatpush1.msra.mxu0 %v539
  %557 = vmatprep.subr.mxu0 0.0
  %558 = vmatpush1.msra.mxu0 %v540
  %559 = vmatprep.subr.mxu0 0.0
  %560 = vmatpush1.msra.mxu0 0.0
  %561 = vmatprep.subr.mxu0 0.0
  %562 = vmatpush1.msra.mxu0 0.0
  %563 = vmatprep.subr.mxu0 0.0
  %564 = vmatpush1.msra.mxu0 0.0
  %565 = vmatprep.subr.mxu0 0.0
  %566 = vmatpush1.msra.mxu0 0.0
  %567 = vmatprep.subr.mxu0 0.0
  %568 = vmatpush1.msra.mxu0 0.0
  %569 = vmatprep.subr.mxu0 0.0
  %570 = vmatpush1.msra.mxu0 0.0
  %571 = vmatprep.subr.mxu0 0.0
  %572 = vmatpush1.msra.mxu0 0.0
  %573 = vmatprep.subr.mxu0 0.0
  %574 = vmatpush1.msra.mxu0 0.0
  %575 = vmatprep.subr.mxu0 0.0
  %576 = vmatpush1.msra.mxu0 0.0
  %577 = vmatprep.subr.mxu0 0.0
  %578 = vmatpush1.msra.mxu0 0.0
  %579 = vmatprep.subr.mxu0 0.0
  %580 = vmatpush1.msra.mxu0 0.0
  %581 = vmatprep.subr.mxu0 0.0
  %582 = vmatpush1.msra.mxu0 0.0
  %583 = vmatprep.subr.mxu0 0.0
  %584 = vmatpush1.msra.mxu0 0.0
  %585 = vmatprep.subr.mxu0 0.0
  %586 = vmatpush1.msra.mxu0 0.0
  %587 = vmatprep.subr.mxu0 0.0
  %588 = vmatpush1.msra.mxu0 0.0
  %589 = vmatprep.subr.mxu0 0.0
  %590 = vmatpush1.msra.mxu0 0.0
  %591 = vmatprep.subr.mxu0 0.0
  %592 = vmatpush1.msra.mxu0 0.0
  %593 = vmatprep.subr.mxu0 0.0
  %594 = vmatpush1.msra.mxu0 0.0
  %595 = vmatprep.subr.mxu0 0.0
  %596 = vmatpush1.msra.mxu0 0.0
  %597 = vmatprep.subr.mxu0 0.0
  %598 = vmatpush1.msra.mxu0 0.0
  %599 = vmatprep.subr.mxu0 0.0
  %600 = vmatpush1.msra.mxu0 0.0
  %601 = vmatprep.subr.mxu0 0.0
  %602 = vmatpush1.msra.mxu0 0.0
  %603 = vmatprep.subr.mxu0 0.0
  %604 = vmatpush1.msra.mxu0 0.0
  %605 = vmatprep.subr.mxu0 0.0
  %606 = vmatpush1.msra.mxu0 0.0
  %607 = vmatprep.subr.mxu0 0.0
  %608 = vmatpush1.msra.mxu0 0.0
  %609 = vmatprep.subr.mxu0 0.0
  %610 = vmatpush1.msra.mxu0 0.0
  %611 = vmatprep.subr.mxu0 0.0
  %612 = vmatpush1.msra.mxu0 0.0
  %613 = vmatprep.subr.mxu0 0.0
  %614 = vmatpush1.msra.mxu0 0.0
  %615 = vmatprep.subr.mxu0 0.0
  %616 = vmatpush1.msra.mxu0 0.0
  %617 = vmatprep.subr.mxu0 0.0
  %618 = vmatpush1.msra.mxu0 0.0
  %619 = vmatprep.mubr.f32.mxu0 0.0
  %620 = vmatmul.mubr.f32.gmra.mrb[0].mxu0 %v550
  %v621 = vpop.f32.mrb[0].mxu0
  %v622 = vadd.f32 %v546, %v621
  %v623 = vpop.f32.mrb[0].mxu0
  %624 = vmatprep.mubr.f32.mxu0 0.0
  %625 = vmatmul.mubr.f32.gmra.mrb[0].mxu0 %v553
  %v626 = vpop.f32.mrb[0].mxu0
  %v627 = vadd.f32 %v546, %v626
  %v628 = vpop.f32.mrb[0].mxu0
  %629 = vdwg.mxu0
  %vm630 = vcmask 23552
  %631 = vst.msk [vmem:[%s7] sm:$0xff] %vm630, %v622
  %632 = vst.msk [vmem:[%s7 + $0x8] sm:$0xff] %vm630, %v627
  // Predicated region
  $region30: #{tpu_custom_call.1} parent=0 // pred_check
    _
  $region31: #{tpu_custom_call.1} parent=0 // pred_check_branch
    %634 = sbr.rel (0) target = $region33
  $region32: #{tpu_custom_call.1} parent=0 // pred_region
    _
  $region33: #{tpu_custom_call.1} parent=0 // pred_fallthru
    _
  // Predicated region
  $region34: #{tpu_custom_call.1} parent=0 // pred_check
    _
  $region35: #{tpu_custom_call.1} parent=0 // pred_check_branch
    %636 = sbr.rel (0) target = $region37
  $region36: #{tpu_custom_call.1} parent=0 // pred_region
    _
  $region37: #{tpu_custom_call.1} parent=0 // pred_fallthru
    _

</llo_original>
